<compile_context>
chip_gen: v7x
topology: tpu7x:2x2x1
jax: 0.10.0
libtpu: 0.0.40
codegen_flags: <defaults>
</compile_context>

<pallas_src>
import functools

import jax
import jax.numpy as jnp
from jax.experimental import pallas as pl
from jax.experimental.pallas import tpu as pltpu

EPS = 1e-5
_T_TILE_MAX = 512
_VMEM_LIMIT = 48 * 1024 * 1024


def _round_up(a, m):
    return (a + m - 1) // m * m


# ---------------------------------------------------------------------------
# Kernel 1: dilated conv1d (K taps fused into one matmul) + bias + ReLU,
# plus per-(batch, time-tile) partial sum / sum-of-squares for batch-norm.
# ---------------------------------------------------------------------------
def _conv_relu_stats_kernel(x_ref, w_ref, b_ref, act_ref, stats_ref, *,
                            dilation, k_size, t_tile, t_valid):
    t = pl.program_id(1)
    base = pl.multiple_of(t * t_tile, 128)          # 128-aligned dynamic start
    span = (k_size - 1) * dilation                  # halo width

    # Halo window for this time tile (bf16): (C_in, t_tile + span)
    win = x_ref[0, :, pl.ds(base, t_tile + span)]
    # Stack the K shifted taps along the contraction axis -> one MXU matmul.
    rhs = jnp.concatenate(
        [win[:, k * dilation:k * dilation + t_tile] for k in range(k_size)],
        axis=0)                                     # (K*C_in, t_tile) bf16

    y = jnp.dot(w_ref[...], rhs, preferred_element_type=jnp.float32)
    y = jnp.maximum(y + b_ref[...], 0.0)            # bias + ReLU in f32
    act_ref[0] = y.astype(act_ref.dtype)            # bf16 intermediate to HBM

    # Per-(batch, tile) partial stats; mask the zero-padded tail beyond T.
    lane = jax.lax.broadcasted_iota(jnp.int32, y.shape, 1)
    valid = (t * t_tile + lane) < t_valid
    ym = jnp.where(valid, y, 0.0)
    s = jnp.sum(ym, axis=-1, keepdims=True)         # (C_out, 1)
    ss = jnp.sum(ym * ym, axis=-1, keepdims=True)   # (C_out, 1)
    stats_ref[0, 0] = jnp.concatenate([s, ss], axis=-1)   # (C_out, 2)


def conv_relu_stats(x_pad, w2, bias_col, *, dilation, k_size, t_tile, n_t, t_valid):
    B, C_in, T_pad = x_pad.shape
    C_out = w2.shape[0]
    t_p = n_t * t_tile
    kernel = functools.partial(_conv_relu_stats_kernel, dilation=dilation,
                               k_size=k_size, t_tile=t_tile, t_valid=t_valid)
    flops = 2 * B * C_out * k_size * C_in * t_p
    bytes_accessed = (B * C_in * T_pad * 2 + C_out * k_size * C_in * 2
                      + C_out * 4 + B * C_out * t_p * 2 + B * n_t * C_out * 2 * 4)
    act, stats = pl.pallas_call(
        kernel,
        out_shape=(jax.ShapeDtypeStruct((B, C_out, t_p), jnp.bfloat16),
                   jax.ShapeDtypeStruct((B, n_t, C_out, 2), jnp.float32)),
        grid_spec=pltpu.PrefetchScalarGridSpec(
            num_scalar_prefetch=0,
            grid=(B, n_t),
            in_specs=[
                pl.BlockSpec((1, C_in, T_pad), lambda b, t: (b, 0, 0)),
                pl.BlockSpec((C_out, k_size * C_in), lambda b, t: (0, 0)),
                pl.BlockSpec((C_out, 1), lambda b, t: (0, 0)),
            ],
            out_specs=[
                pl.BlockSpec((1, C_out, t_tile), lambda b, t: (b, 0, t)),
                pl.BlockSpec((1, 1, C_out, 2), lambda b, t: (b, t, 0, 0)),
            ],
        ),
        compiler_params=pltpu.CompilerParams(
            dimension_semantics=("parallel", "parallel"),
            vmem_limit_bytes=_VMEM_LIMIT),
        cost_estimate=pl.CostEstimate(flops=int(flops), transcendentals=0,
                                      bytes_accessed=int(bytes_accessed)),
    )(x_pad, w2, bias_col)
    return act, stats


# ---------------------------------------------------------------------------
# Kernel 2: per-channel affine normalization (batch-norm apply), elementwise.
# ---------------------------------------------------------------------------
def _bn_apply_kernel(act_ref, scale_ref, shift_ref, out_ref):
    y = act_ref[0].astype(jnp.float32)
    out_ref[0] = (y * scale_ref[...] + shift_ref[...]).astype(out_ref.dtype)


def bn_apply(act, scale_col, shift_col, *, t_tile, out_dtype):
    B, C_out, t_p = act.shape
    n_t = t_p // t_tile
    bytes_accessed = B * C_out * t_p * 2 + B * C_out * t_p * 4 + 2 * C_out * 4
    return pl.pallas_call(
        _bn_apply_kernel,
        out_shape=jax.ShapeDtypeStruct((B, C_out, t_p), out_dtype),
        grid_spec=pltpu.PrefetchScalarGridSpec(
            num_scalar_prefetch=0,
            grid=(B, n_t),
            in_specs=[
                pl.BlockSpec((1, C_out, t_tile), lambda b, t: (b, 0, t)),
                pl.BlockSpec((C_out, 1), lambda b, t: (0, 0)),
                pl.BlockSpec((C_out, 1), lambda b, t: (0, 0)),
            ],
            out_specs=pl.BlockSpec((1, C_out, t_tile), lambda b, t: (b, 0, t)),
        ),
        compiler_params=pltpu.CompilerParams(
            dimension_semantics=("parallel", "parallel"),
            vmem_limit_bytes=_VMEM_LIMIT),
        cost_estimate=pl.CostEstimate(flops=int(2 * B * C_out * t_p),
                                      transcendentals=0,
                                      bytes_accessed=int(bytes_accessed)),
    )(act, scale_col, shift_col)


# ---------------------------------------------------------------------------
# TDNNBlock forward (glue + the two Pallas kernels).
# ---------------------------------------------------------------------------
def tdnn_block_forward(x, weight, bias, gamma, beta, *, dilation):
    """x: (B, C_in, T); weight: (C_out, C_in, K); bias/gamma/beta: (C_out,)."""
    B, C_in, T = x.shape
    C_out, _, K = weight.shape
    assert K % 2 == 1, "odd kernel size assumed for symmetric 'same' padding"

    pad = dilation * (K - 1) // 2
    t_tile = min(_T_TILE_MAX, _round_up(T, 128))    # lane-dense time tile
    t_p = _round_up(T, t_tile)
    n_t = t_p // t_tile

    # Reflect "same" padding + zero tail up to the lane-dense padded length.
    x_pad = jnp.pad(x, ((0, 0), (0, 0), (pad, pad)), mode="reflect")
    x_pad = jnp.pad(x_pad, ((0, 0), (0, 0), (0, t_p - T)))
    x_pad = x_pad.astype(jnp.bfloat16)

    # Fuse the K taps: LHS (C_out, K*C_in), columns ordered tap-major to match
    # the in-kernel concatenation order.
    w2 = jnp.transpose(weight, (0, 2, 1)).reshape(C_out, K * C_in).astype(jnp.bfloat16)
    bias_col = bias.astype(jnp.float32).reshape(C_out, 1)

    act, stats = conv_relu_stats(x_pad, w2, bias_col, dilation=dilation,
                                 k_size=K, t_tile=t_tile, n_t=n_t, t_valid=T)

    # Fold per-(batch, tile) partials into batch-norm scale/shift (glue).
    count = jnp.float32(B * T)
    s = jnp.sum(stats[..., 0], axis=(0, 1))
    ss = jnp.sum(stats[..., 1], axis=(0, 1))
    mean = s / count
    var = jnp.maximum(ss / count - mean * mean, 0.0)     # biased var, clamped
    inv_std = jax.lax.rsqrt(var + EPS)
    scale = gamma * inv_std
    shift = beta - mean * scale

    out = bn_apply(act, scale.reshape(C_out, 1), shift.reshape(C_out, 1),
                   t_tile=t_tile, out_dtype=x.dtype)
    return out[:, :, :T]


# ---------------------------------------------------------------------------
# Res2NetBlock forward.
# ---------------------------------------------------------------------------
@functools.partial(jax.jit, static_argnames=("scale", "dilation"))
def res2net_block_forward(x, params, *, scale, dilation):
    """x: (B, C, T); params: list of (weight, bias, gamma, beta) for blocks 1..scale-1."""
    chunks = jnp.split(x, scale, axis=1)
    ys = [chunks[0]]
    for i in range(1, scale):
        inp = chunks[i] if i == 1 else chunks[i] + ys[-1]
        w, b, g, bt = params[i - 1]
        ys.append(tdnn_block_forward(inp, w, b, g, bt, dilation=dilation))
    return jnp.concatenate(ys, axis=1)


# ---------------------------------------------------------------------------
# Pure-JAX (f32) reference for verification.
# ---------------------------------------------------------------------------
def _tdnn_block_ref(x, weight, bias, gamma, beta, *, dilation):
    B, C_in, T = x.shape
    C_out, _, K = weight.shape
    pad = dilation * (K - 1) // 2
    xp = jnp.pad(x, ((0, 0), (0, 0), (pad, pad)), mode="reflect")
    y = jnp.zeros((B, C_out, T), jnp.float32)
    for k in range(K):
        y = y + jnp.einsum("oi,bit->bot", weight[:, :, k],
                           xp[:, :, k * dilation:k * dilation + T])
    y = jnp.maximum(y + bias[None, :, None], 0.0)
    mean = y.mean(axis=(0, 2))
    var = y.var(axis=(0, 2))                              # biased
    yhat = (y - mean[None, :, None]) * jax.lax.rsqrt(var[None, :, None] + EPS)
    return yhat * gamma[None, :, None] + beta[None, :, None]


def res2net_block_ref(x, params, *, scale, dilation):
    chunks = jnp.split(x, scale, axis=1)
    ys = [chunks[0]]
    for i in range(1, scale):
        inp = chunks[i] if i == 1 else chunks[i] + ys[-1]
        w, b, g, bt = params[i - 1]
        ys.append(_tdnn_block_ref(inp, w, b, g, bt, dilation=dilation))
    return jnp.concatenate(ys, axis=1)


if __name__ == "__main__":
    # Small shapes consistent with Res2NetBlock: x is (B, in_channels, time).
    B, C, T = 2, 32, 64
    scale, K, dilation = 4, 3, 2
    in_ch = C // scale
    hid = C // scale

    key = jax.random.PRNGKey(0)
    kx, *pkeys = jax.random.split(key, 1 + 2 * (scale - 1))
    x = jax.random.normal(kx, (B, C, T), jnp.float32)

    params = []
    for i in range(scale - 1):
        w = jax.random.normal(pkeys[2 * i], (hid, in_ch, K), jnp.float32) * 0.1
        b = jax.random.normal(pkeys[2 * i + 1], (hid,), jnp.float32) * 0.1
        g = jnp.ones((hid,), jnp.float32)     # BatchNorm1d affine init
        bt = jnp.zeros((hid,), jnp.float32)
        params.append((w, b, g, bt))

    out = jax.block_until_ready(
        res2net_block_forward(x, params, scale=scale, dilation=dilation))
    ref = jax.block_until_ready(
        res2net_block_ref(x, params, scale=scale, dilation=dilation))

    assert out.shape == (B, C, T), out.shape
    max_err = float(jnp.max(jnp.abs(out - ref)))
    # bf16 matmul operands / bf16 intermediate vs f32 reference -> loose tolerance.
    assert jnp.allclose(out, ref, rtol=5e-2, atol=7.5e-2), max_err
    print("KERNEL_OK")
</pallas_src>

<mosaic_0001>
module attributes {stable_mosaic.version = 11 : i64} {
  func.func @_bn_apply_kernel(%arg0: i32, %arg1: i32, %arg2: memref<1x8x128xbf16, #tpu.memory_space<vmem>>, %arg3: memref<8x1xf32, #tpu.memory_space<vmem>>, %arg4: memref<8x1xf32, #tpu.memory_space<vmem>>, %arg5: memref<1x8x128xf32, #tpu.memory_space<vmem>>) attributes {dimension_semantics = [#tpu.dimension_semantics<parallel>, #tpu.dimension_semantics<parallel>], iteration_bounds = array<i64: 2, 1>, scalar_prefetch = 0 : i64, scratch_operands = 0 : i64, tpu.core_type = #tpu.core_type<tc>, window_params = [{transform_indices = @transform_0, window_bounds = array<i64: 1, 8, 128>}, {pipeline_mode = #tpu.pipeline_mode<synchronous>, transform_indices = @transform_1, window_bounds = array<i64: 8, 1>}, {pipeline_mode = #tpu.pipeline_mode<synchronous>, transform_indices = @transform_2, window_bounds = array<i64: 8, 1>}, {transform_indices = @transform_3, window_bounds = array<i64: 1, 8, 128>}]} {
    %c0 = arith.constant 0 : index
    %c0_0 = arith.constant 0 : index
    %c0_1 = arith.constant 0 : index
    %0 = vector.load %arg2[%c0, %c0_0, %c0_1] : memref<1x8x128xbf16, #tpu.memory_space<vmem>>, vector<1x8x128xbf16>
    %1 = vector.shape_cast %0 : vector<1x8x128xbf16> to vector<8x128xbf16>
    %2 = arith.extf %1 : vector<8x128xbf16> to vector<8x128xf32>
    %c0_2 = arith.constant 0 : index
    %c0_3 = arith.constant 0 : index
    %3 = vector.load %arg3[%c0_2, %c0_3] : memref<8x1xf32, #tpu.memory_space<vmem>>, vector<8x1xf32>
    %4 = vector.broadcast %3 : vector<8x1xf32> to vector<8x128xf32>
    %5 = arith.mulf %2, %4 : vector<8x128xf32>
    %c0_4 = arith.constant 0 : index
    %c0_5 = arith.constant 0 : index
    %6 = vector.load %arg4[%c0_4, %c0_5] : memref<8x1xf32, #tpu.memory_space<vmem>>, vector<8x1xf32>
    %7 = vector.broadcast %6 : vector<8x1xf32> to vector<8x128xf32>
    %8 = arith.addf %5, %7 : vector<8x128xf32>
    %c0_6 = arith.constant 0 : index
    %c0_7 = arith.constant 0 : index
    %c0_8 = arith.constant 0 : index
    %9 = vector.load %arg5[%c0_6, %c0_7, %c0_8] : memref<1x8x128xf32, #tpu.memory_space<vmem>>, vector<1x8x128xf32>
    %10 = vector.shape_cast %9 : vector<1x8x128xf32> to vector<8x128xf32>
    %11 = vector.shape_cast %8 : vector<8x128xf32> to vector<1x8x128xf32>
    tpu.vector_store %arg5[%c0_6, %c0_7, %c0_8], %11 {strides = array<i32>} : memref<1x8x128xf32, #tpu.memory_space<vmem>>, vector<1x8x128xf32>,
    return
  }
  func.func @transform_0(%arg0: i32, %arg1: i32) -> (i32, i32, i32) {
    %c0_i32 = arith.constant 0 : i32
    %c0_i32_0 = arith.constant 0 : i32
    return %arg0, %c0_i32, %arg1 : i32, i32, i32
  }
  func.func @transform_1(%arg0: i32, %arg1: i32) -> (i32, i32) {
    %c0_i32 = arith.constant 0 : i32
    %c0_i32_0 = arith.constant 0 : i32
    %c0_i32_1 = arith.constant 0 : i32
    return %c0_i32, %c0_i32_0 : i32, i32
  }
  func.func @transform_2(%arg0: i32, %arg1: i32) -> (i32, i32) {
    %c0_i32 = arith.constant 0 : i32
    %c0_i32_0 = arith.constant 0 : i32
    %c0_i32_1 = arith.constant 0 : i32
    return %c0_i32, %c0_i32_0 : i32, i32
  }
  func.func @transform_3(%arg0: i32, %arg1: i32) -> (i32, i32, i32) {
    %c0_i32 = arith.constant 0 : i32
    %c0_i32_0 = arith.constant 0 : i32
    return %arg0, %c0_i32, %arg1 : i32, i32, i32
  }
}

module attributes {stable_mosaic.version = 11 : i64} {
  func.func @_conv_relu_stats_kernel(%arg0: i32, %arg1: i32, %arg2: memref<1x8x132xbf16, #tpu.memory_space<vmem>>, %arg3: memref<8x24xbf16, #tpu.memory_space<vmem>>, %arg4: memref<8x1xf32, #tpu.memory_space<vmem>>, %arg5: memref<1x8x128xbf16, #tpu.memory_space<vmem>>, %arg6: memref<1x1x8x2xf32, #tpu.memory_space<vmem>>) attributes {dimension_semantics = [#tpu.dimension_semantics<parallel>, #tpu.dimension_semantics<parallel>], iteration_bounds = array<i64: 2, 1>, scalar_prefetch = 0 : i64, scratch_operands = 0 : i64, tpu.core_type = #tpu.core_type<tc>, window_params = [{transform_indices = @transform_0, window_bounds = array<i64: 1, 8, 132>}, {pipeline_mode = #tpu.pipeline_mode<synchronous>, transform_indices = @transform_1, window_bounds = array<i64: 8, 24>}, {pipeline_mode = #tpu.pipeline_mode<synchronous>, transform_indices = @transform_2, window_bounds = array<i64: 8, 1>}, {transform_indices = @transform_3, window_bounds = array<i64: 1, 8, 128>}, {transform_indices = @transform_4, window_bounds = array<i64: 1, 1, 8, 2>}]} {
    %c128_i32 = arith.constant 128 : i32
    %0 = arith.muli %arg1, %c128_i32 : i32
    %1 = tpu.assume_multiple %0, 128 : i32
    %c0 = arith.constant 0 : index
    %c0_0 = arith.constant 0 : index
    %2 = arith.index_cast %1 : i32 to index
    %3 = vector.load %arg2[%c0, %c0_0, %2] : memref<1x8x132xbf16, #tpu.memory_space<vmem>>, vector<1x8x132xbf16>
    %4 = vector.shape_cast %3 : vector<1x8x132xbf16> to vector<8x132xbf16>
    %5 = vector.extract_strided_slice %4 {offsets = [0, 0], sizes = [8, 128], strides = [1, 1]} : vector<8x132xbf16> to vector<8x128xbf16>
    %6 = vector.extract_strided_slice %4 {offsets = [0, 2], sizes = [8, 128], strides = [1, 1]} : vector<8x132xbf16> to vector<8x128xbf16>
    %7 = vector.extract_strided_slice %4 {offsets = [0, 4], sizes = [8, 128], strides = [1, 1]} : vector<8x132xbf16> to vector<8x128xbf16>
    %8 = tpu.concatenate %5, %6, %7 in 0 : vector<8x128xbf16>, vector<8x128xbf16>, vector<8x128xbf16> -> vector<24x128xbf16>
    %c0_1 = arith.constant 0 : index
    %c0_2 = arith.constant 0 : index
    %9 = vector.load %arg3[%c0_1, %c0_2] : memref<8x24xbf16, #tpu.memory_space<vmem>>, vector<8x24xbf16>
    %cst = arith.constant dense<0.000000e+00> : vector<8x128xf32>
    %10 = tpu.matmul %9, %8, %cst {dimension_numbers = #tpu.dot_dimension_numbers<[1], [0], [0], [1], [0, 0, 1, 1], [], []>} : vector<8x24xbf16>, vector<24x128xbf16>, vector<8x128xf32> -> vector<8x128xf32>
    %c0_3 = arith.constant 0 : index
    %c0_4 = arith.constant 0 : index
    %11 = vector.load %arg4[%c0_3, %c0_4] : memref<8x1xf32, #tpu.memory_space<vmem>>, vector<8x1xf32>
    %12 = vector.broadcast %11 : vector<8x1xf32> to vector<8x128xf32>
    %13 = arith.addf %10, %12 : vector<8x128xf32>
    %cst_5 = arith.constant 0.000000e+00 : f32
    %14 = vector.broadcast %cst_5 : f32 to vector<8x128xf32>
    %15 = arith.maximumf %13, %14 : vector<8x128xf32>
    %16 = arith.truncf %15 : vector<8x128xf32> to vector<8x128xbf16>
    %c0_6 = arith.constant 0 : index
    %c0_7 = arith.constant 0 : index
    %c0_8 = arith.constant 0 : index
    %17 = vector.load %arg5[%c0_6, %c0_7, %c0_8] : memref<1x8x128xbf16, #tpu.memory_space<vmem>>, vector<1x8x128xbf16>
    %18 = vector.shape_cast %17 : vector<1x8x128xbf16> to vector<8x128xbf16>
    %19 = vector.shape_cast %16 : vector<8x128xbf16> to vector<1x8x128xbf16>
    tpu.vector_store %arg5[%c0_6, %c0_7, %c0_8], %19 {strides = array<i32>} : memref<1x8x128xbf16, #tpu.memory_space<vmem>>, vector<1x8x128xbf16>,
    %20 = tpu.iota {dimensions = array<i32: 1>} : vector<8x128xi32>
    %c128_i32_9 = arith.constant 128 : i32
    %21 = arith.muli %arg1, %c128_i32_9 : i32
    %22 = vector.broadcast %21 : i32 to vector<8x128xi32>
    %23 = arith.addi %22, %20 : vector<8x128xi32>
    %c64_i32 = arith.constant 64 : i32
    %24 = vector.broadcast %c64_i32 : i32 to vector<8x128xi32>
    %25 = arith.cmpi slt, %23, %24 : vector<8x128xi32>
    %cst_10 = arith.constant 0.000000e+00 : f32
    %26 = vector.broadcast %cst_10 : f32 to vector<8x128xf32>
    %27 = arith.select %25, %15, %26 : vector<8x128xi1>, vector<8x128xf32>
    %cst_11 = arith.constant dense<0.000000e+00> : vector<8xf32>
    %28 = vector.multi_reduction <add>, %27, %cst_11 [1] : vector<8x128xf32> to vector<8xf32>
    %29 = vector.shape_cast %28 : vector<8xf32> to vector<8x1xf32>
    %30 = arith.mulf %27, %27 : vector<8x128xf32>
    %cst_12 = arith.constant dense<0.000000e+00> : vector<8xf32>
    %31 = vector.multi_reduction <add>, %30, %cst_12 [1] : vector<8x128xf32> to vector<8xf32>
    %32 = vector.shape_cast %31 : vector<8xf32> to vector<8x1xf32>
    %33 = tpu.concatenate %29, %32 in 1 : vector<8x1xf32>, vector<8x1xf32> -> vector<8x2xf32>
    %c0_13 = arith.constant 0 : index
    %c0_14 = arith.constant 0 : index
    %c0_15 = arith.constant 0 : index
    %c0_16 = arith.constant 0 : index
    %34 = vector.load %arg6[%c0_13, %c0_14, %c0_15, %c0_16] : memref<1x1x8x2xf32, #tpu.memory_space<vmem>>, vector<1x1x8x2xf32>
    %35 = vector.shape_cast %34 : vector<1x1x8x2xf32> to vector<8x2xf32>
    %36 = vector.shape_cast %33 : vector<8x2xf32> to vector<1x1x8x2xf32>
    tpu.vector_store %arg6[%c0_13, %c0_14, %c0_15, %c0_16], %36 {strides = array<i32>} : memref<1x1x8x2xf32, #tpu.memory_space<vmem>>, vector<1x1x8x2xf32>,
    return
  }
  func.func @transform_0(%arg0: i32, %arg1: i32) -> (i32, i32, i32) {
    %c0_i32 = arith.constant 0 : i32
    %c0_i32_0 = arith.constant 0 : i32
    %c0_i32_1 = arith.constant 0 : i32
    return %arg0, %c0_i32, %c0_i32_0 : i32, i32, i32
  }
  func.func @transform_1(%arg0: i32, %arg1: i32) -> (i32, i32) {
    %c0_i32 = arith.constant 0 : i32
    %c0_i32_0 = arith.constant 0 : i32
    %c0_i32_1 = arith.constant 0 : i32
    return %c0_i32, %c0_i32_0 : i32, i32
  }
  func.func @transform_2(%arg0: i32, %arg1: i32) -> (i32, i32) {
    %c0_i32 = arith.constant 0 : i32
    %c0_i32_0 = arith.constant 0 : i32
    %c0_i32_1 = arith.constant 0 : i32
    return %c0_i32, %c0_i32_0 : i32, i32
  }
  func.func @transform_3(%arg0: i32, %arg1: i32) -> (i32, i32, i32) {
    %c0_i32 = arith.constant 0 : i32
    %c0_i32_0 = arith.constant 0 : i32
    return %arg0, %c0_i32, %arg1 : i32, i32, i32
  }
  func.func @transform_4(%arg0: i32, %arg1: i32) -> (i32, i32, i32, i32) {
    %c0_i32 = arith.constant 0 : i32
    %c0_i32_0 = arith.constant 0 : i32
    %c0_i32_1 = arith.constant 0 : i32
    return %arg0, %arg1, %c0_i32, %c0_i32_0 : i32, i32, i32, i32
  }
}

</mosaic_0001>

<llo_original>
// kernel: split.9
$region0: #{split.9}
  #allocation0 [shape = 'u32[2048]{0}', space=vmem, size = 0x2000, scoped, tag = 'scoped memory for split.9']
  #allocation1 [shape = 'u32[2048]{0}', space=vmem, size = 0x2000, scoped, tag = 'scoped memory for split.9']
  #allocation2 [shape = 'u32[2048]{0}', space=vmem, size = 0x2000, scoped, tag = 'scoped memory for split.9']
  #allocation3 [shape = 'u32[2048]{0}', space=vmem, size = 0x2000, scoped, tag = 'scoped memory for split.9']
  #allocation4 [shape = 'u32[2048]{0}', space=vmem, size = 0x2000, scoped, tag = 'scoped memory for split.9']
  #allocation5 [shape = 's32[1]{0}', space=sflag, size = 0x4, scoped, tag = 'scoped memory for split.9']
  %s0 = inlined_call_operand.vmem [shape: f32[2,32,64], index: 0, kind: input, shape index: {}]
  %s1 = inlined_call_operand.vmem [shape: bf16[2,8,64], index: 1, kind: output, shape index: {}]
  %s2 = scalar_lea.vmem %s0, 8
  %s3 = scalar_lea.vmem %s0, 8
  %s4 = scalar_lea.vmem %s0, 8
  %v5 = vld [vmem:[%s4] sm:$0xff]
  %v6 = vpack.c.bf16 0.0, %v5
  %7 = vst [vmem:[%s1] sm:$0xf] %v6
  %s8 = scalar_lea.vmem %s4, 32
  %v9 = vld [vmem:[%s8] sm:$0xff]
  %s10 = scalar_lea.vmem %s1, 4
  %v11 = vpack.c.bf16 0.0, %v9
  %12 = vst [vmem:[%s10] sm:$0xf] %v11

// kernel: res2net_block_forward.7
$region0: #{res2net_block_forward.7}
  #allocation0 [shape = 'u32[]', space=smem, size = 0x4, offset = 0x4, fixed_abs, tag = 'smem constant byte address 0x4 - core index']
  #allocation1 [shape = 'u32[144,128]{1,0:T(1,128)}', space=vmem, size = 0x12000, scoped, tag = 'internal scratch']
  %s0 = inlined_call_operand.vmem [shape: bf16[2,8,128], index: 0, kind: input, shape index: {}]
  %s1 = inlined_call_operand.vmem [shape: f32[8,1], index: 1, kind: input, shape index: {}]
  %s2 = inlined_call_operand.vmem [shape: f32[8,1], index: 2, kind: input, shape index: {}]
  %s3 = inlined_call_operand.vmem [shape: f32[2,8,128], index: 3, kind: output, shape index: {}]
  %s4 = sld [smem:[#allocation0]]
  $region45: #{res2net_block_forward.7} parent=0
    _
  %s6 = ssub.s32 1, %s4
  %s7 = scalar_select 0, %s6, %s4
  loop: start=0, step=1, limit=4
  $region2: #{res2net_block_forward.7} parent=0 // loop_pre_header
    _
  $region3: #{res2net_block_forward.7} parent=0 // loop_header
    %s9 = sphi 0, %s13
    %p10 = scmp.ge.s32.totalorder %s9, 4
    %s16 = sphi 0, %s28
    %s17 = sphi 0, %s24
    %s18 = sphi 0, %s16
    %s19 = sphi 0, %s17
    %s20 = sphi 0, %s18
    %s21 = sphi 0, %s19
    %s33 = sphi 0, %s35
    %s36 = sphi 0, %s33
    %s37 = sphi 0, %s36
    %s53 = sphi 0, %s37
    %s57 = sphi 0, %s57
    %s59 = sphi 0, %s57
    %s60 = sphi 0, %s59
    %s74 = sphi 0, %s60
    %s78 = sphi 0, %s78
    %s80 = sphi 0, %s78
    %s81 = sphi 0, %s80
    %s95 = sphi 0, %s81
    %s103 = sphi 0, %s105
    %s106 = sphi 0, %s103
    %s107 = sphi 0, %s106
    %s123 = sphi 0, %s107
  $region4: #{res2net_block_forward.7} parent=0 // loop_header_branch
    %12 = sbr.rel (%p10) target = $region8
  $region5: #{res2net_block_forward.7} parent=0 // loop_body
    %s14 = ssub.s32 %s9, 1
    %s15 = ssub.s32 %s9, 2
    %s22 = sadd.s32 1, %s17
    %p23 = scmp.ge.s32.totalorder %s22, 1
    %s24 = scalar_select %p23, 0, %s22
    %s25 = sadd.s32 1, %s16
    %s26 = scalar_select %p23, %s25, %s16
    %p27 = scmp.ge.s32.totalorder %s26, 2
    %s28 = scalar_select %p27, 0, %s26
    %s29 = ssub.s32 %s16, %s28
    %s30 = ssub.s32 %s17, %s24
    %s31 = sor.u32 %s29, %s30
    %p32 = scmp.eq.s32.totalorder %s31, 0
    %s34 = sadd.s32 %s33, 1
    %s35 = scalar_select %p32, %s33, %s34
    %p38 = pneg %p32
    %p39 = scmp.eq.s32.totalorder %s9, 1
    %p40 = por %p38, %p39
    %p41 = scmp.ne.s32.totalorder %s33, %s36
    %p42 = scmp.eq.s32.totalorder %s9, 0
    %p43 = por %p41, %p42
    %p44 = scmp.ne.s32.totalorder %s33, %s36
    %p45 = scmp.eq.s32.totalorder %s14, 1
    %p46 = por %p44, %p45
    %p47 = scmp.ne.s32.totalorder %s36, %s37
    %p48 = scmp.eq.s32.totalorder %s14, 0
    %p49 = por %p47, %p48
    %p50 = scmp.ne.s32.totalorder %s36, %s37
    %p51 = scmp.eq.s32.totalorder %s15, 1
    %p52 = por %p50, %p51
    %p54 = scmp.ne.s32.totalorder %s37, %s53
    %p55 = scmp.eq.s32.totalorder %s15, 0
    %p56 = por %p54, %p55
    %s58 = sadd.s32 %s57, 1
    %p61 = scmp.eq.s32.totalorder %s9, 1
    %p62 = scmp.ne.s32.totalorder %s57, %s59
    %p63 = scmp.eq.s32.totalorder %s9, 0
    %p64 = por %p62, %p63
    %p65 = scmp.ne.s32.totalorder %s57, %s59
    %p66 = scmp.eq.s32.totalorder %s14, 1
    %p67 = por %p65, %p66
    %p68 = scmp.ne.s32.totalorder %s59, %s60
    %p69 = scmp.eq.s32.totalorder %s14, 0
    %p70 = por %p68, %p69
    %p71 = scmp.ne.s32.totalorder %s59, %s60
    %p72 = scmp.eq.s32.totalorder %s15, 1
    %p73 = por %p71, %p72
    %p75 = scmp.ne.s32.totalorder %s60, %s74
    %p76 = scmp.eq.s32.totalorder %s15, 0
    %p77 = por %p75, %p76
    %s79 = sadd.s32 %s78, 1
    %p82 = scmp.eq.s32.totalorder %s9, 1
    %p83 = scmp.ne.s32.totalorder %s78, %s80
    %p84 = scmp.eq.s32.totalorder %s9, 0
    %p85 = por %p83, %p84
    %p86 = scmp.ne.s32.totalorder %s78, %s80
    %p87 = scmp.eq.s32.totalorder %s14, 1
    %p88 = por %p86, %p87
    %p89 = scmp.ne.s32.totalorder %s80, %s81
    %p90 = scmp.eq.s32.totalorder %s14, 0
    %p91 = por %p89, %p90
    %p92 = scmp.ne.s32.totalorder %s80, %s81
    %p93 = scmp.eq.s32.totalorder %s15, 1
    %p94 = por %p92, %p93
    %p96 = scmp.ne.s32.totalorder %s81, %s95
    %p97 = scmp.eq.s32.totalorder %s15, 0
    %p98 = por %p96, %p97
    %s99 = ssub.s32 %s16, %s28
    %s100 = ssub.s32 %s17, %s24
    %s101 = sor.u32 %s99, %s100
    %p102 = scmp.eq.s32.totalorder %s101, 0
    %s104 = sadd.s32 %s103, 1
    %s105 = scalar_select %p102, %s103, %s104
    %p108 = pneg %p102
    %p109 = scmp.eq.s32.totalorder %s9, 1
    %p110 = por %p108, %p109
    %p111 = scmp.ne.s32.totalorder %s103, %s106
    %p112 = scmp.eq.s32.totalorder %s9, 0
    %p113 = por %p111, %p112
    %p114 = scmp.ne.s32.totalorder %s103, %s106
    %p115 = scmp.eq.s32.totalorder %s14, 1
    %p116 = por %p114, %p115
    %p117 = scmp.ne.s32.totalorder %s106, %s107
    %p118 = scmp.eq.s32.totalorder %s14, 0
    %p119 = por %p117, %p118
    %p120 = scmp.ne.s32.totalorder %s106, %s107
    %p121 = scmp.eq.s32.totalorder %s15, 1
    %p122 = por %p120, %p121
    %p124 = scmp.ne.s32.totalorder %s107, %s123
    %p125 = scmp.eq.s32.totalorder %s15, 0
    %p126 = por %p124, %p125
    %p127 = scmp.le.s32.totalorder 1, %s9
    %p128 = scmp.lt.s32.totalorder %s9, 3
    %p129 = pnand %p127, %p128
    %p130 = pneg %p129
    // Predicated region
    $region9: #{res2net_block_forward.7} parent=5 // pred_check
      _
    $region10: #{res2net_block_forward.7} parent=5 // pred_check_branch
      %132 = sbr.rel (%p129) target = $region12
    $region11: #{res2net_block_forward.7} parent=5 // pred_region
      %s133 = ssub.s32 %s9, 1
      // Predicated region
      $region13: #{res2net_block_forward.7} parent=11 // pred_check
        %p134 = pneg %p70
      $region14: #{res2net_block_forward.7} parent=11 // pred_check_branch
        %136 = sbr.rel (%p134) target = $region16
      $region15: #{res2net_block_forward.7} parent=11 // pred_region
        _
      $region16: #{res2net_block_forward.7} parent=11 // pred_fallthru
        _
      // Predicated region
      $region17: #{res2net_block_forward.7} parent=11 // pred_check
        %p137 = pneg %p91
      $region18: #{res2net_block_forward.7} parent=11 // pred_check_branch
        %139 = sbr.rel (%p137) target = $region20
      $region19: #{res2net_block_forward.7} parent=11 // pred_region
        _
      $region20: #{res2net_block_forward.7} parent=11 // pred_fallthru
        _
    $region12: #{res2net_block_forward.7} parent=5 // pred_fallthru
      _
    %p140 = scmp.lt.s32.totalorder %s9, 2
    // Predicated region
    $region21: #{res2net_block_forward.7} parent=5 // pred_check
      %p141 = pneg %p140
    $region22: #{res2net_block_forward.7} parent=5 // pred_check_branch
      %143 = sbr.rel (%p141) target = $region24
    $region23: #{res2net_block_forward.7} parent=5 // pred_region
      // Predicated region
      $region25: #{res2net_block_forward.7} parent=23 // pred_check
        %p144 = pneg %p43
      $region26: #{res2net_block_forward.7} parent=23 // pred_check_branch
        %146 = sbr.rel (%p144) target = $region28
      $region27: #{res2net_block_forward.7} parent=23 // pred_region
        %p147 = scmp.lt.s32.totalorder %s16, 1
        %s148 = scalar_select %p147, %s16, 1
        %p149 = scmp.lt.s32.totalorder %s17, 0
        %s150 = scalar_select %p149, %s17, 0
        %s151 = sadd.s32 %s150, %s148
        %s152 = smul.addr %s151, 4
        %s153 = scalar_lea.vmem %s0, %s152
      $region28: #{res2net_block_forward.7} parent=23 // pred_fallthru
        _
    $region24: #{res2net_block_forward.7} parent=5 // pred_fallthru
      _
    %p154 = scmp.le.s32.totalorder 1, %s9
    %p155 = scmp.lt.s32.totalorder %s9, 3
    %p156 = pnand %p154, %p155
    %p157 = pneg %p156
    // Predicated region
    $region29: #{res2net_block_forward.7} parent=5 // pred_check
      _
    $region30: #{res2net_block_forward.7} parent=5 // pred_check_branch
      %159 = sbr.rel (%p156) target = $region32
    $region31: #{res2net_block_forward.7} parent=5 // pred_region
      %s160 = ssub.s32 %s9, 1
      %p161 = scmp.lt.s32.totalorder %s18, 1
      %s162 = scalar_select %p161, %s18, 1
      %p163 = scmp.lt.s32.totalorder %s19, 0
      %s164 = scalar_select %p163, %s19, 0
      %s165 = sadd.s32 %s164, %s162
      %s166 = smul.addr %s165, 4
      %s167 = scalar_lea.vmem %s0, %s166
      %p168 = pneg %p49
      %p169 = pneg %p46
      %p170 = pneg %p70
      %p171 = pneg %p67
      %p172 = pneg %p91
      %p173 = pneg %p88
      %p174 = pneg %p119
      %p175 = pneg %p116
      %p176 = scmp.lt.s32.totalorder %s18, 1
      %s177 = scalar_select %p176, %s18, 1
      %p178 = scmp.lt.s32.totalorder %s19, 0
      %s179 = scalar_select %p178, %s19, 0
      %s180 = sadd.s32 %s179, %s177
      %s181 = smul.addr %s180, 8
      %s182 = scalar_lea.vmem %s3, %s181
      %p183 = scmp.lt.s32.totalorder %s18, 1
      %s184 = scalar_select %p183, %s18, 1
      %p185 = scmp.lt.s32.totalorder %s19, 0
      %s186 = scalar_select %p185, %s19, 0
      %s187 = sadd.s32 %s186, %s184
      %s188 = smul.addr %s187, 4
      %s189 = scalar_lea.vmem %s0, %s188
      %p190 = scmp.lt.s32.totalorder %s18, 1
      %s191 = scalar_select %p190, %s18, 1
      %p192 = scmp.lt.s32.totalorder %s19, 0
      %s193 = scalar_select %p192, %s19, 0
      %s194 = sadd.s32 %s193, %s191
      %s195 = smul.addr %s194, 8
      %s196 = scalar_lea.vmem %s3, %s195
      %v197 = vld [vmem:[%s189] sm:$0xf]
      %v198 = vunpack.c.l.bf16 %v197
      %v199 = vld [vmem:[%s1] sm:$0xff]
      %201 = vset.pattern.permute.xlu0 0
      %202 = vperm.xlu0 %201, %v199
      %v203 = vpop.permute.xlu0 %202
      %v205 = vmul.f32 %v198, %v203
      %v206 = vld [vmem:[%s2] sm:$0xff]
      %208 = vset.pattern.permute.xlu0 0
      %209 = vperm.xlu0 %208, %v206
      %v210 = vpop.permute.xlu0 %209
      %v212 = vadd.f32 %v205, %v210
      %213 = vst [vmem:[%s196] sm:$0xff] %v212
      %p214 = scmp.lt.s32.totalorder %s18, 1
      %s215 = scalar_select %p214, %s18, 1
      %p216 = scmp.lt.s32.totalorder %s19, 0
      %s217 = scalar_select %p216, %s19, 0
      %s218 = sadd.s32 %s217, %s215
      %s219 = smul.addr %s218, 8
      %s220 = scalar_lea.vmem %s3, %s219
      // Predicated region
      $region33: #{res2net_block_forward.7} parent=31 // pred_check
        %p221 = pneg %p116
      $region34: #{res2net_block_forward.7} parent=31 // pred_check_branch
        %223 = sbr.rel (%p221) target = $region36
      $region35: #{res2net_block_forward.7} parent=31 // pred_region
        _
      $region36: #{res2net_block_forward.7} parent=31 // pred_fallthru
        _
    $region32: #{res2net_block_forward.7} parent=5 // pred_fallthru
      _
    %p224 = scmp.le.s32.totalorder 2, %s9
    // Predicated region
    $region37: #{res2net_block_forward.7} parent=5 // pred_check
      %p225 = pneg %p224
    $region38: #{res2net_block_forward.7} parent=5 // pred_check_branch
      %227 = sbr.rel (%p225) target = $region40
    $region39: #{res2net_block_forward.7} parent=5 // pred_region
      %s228 = ssub.s32 %s9, 2
      // Predicated region
      $region41: #{res2net_block_forward.7} parent=39 // pred_check
        %p229 = pneg %p122
      $region42: #{res2net_block_forward.7} parent=39 // pred_check_branch
        %231 = sbr.rel (%p229) target = $region44
      $region43: #{res2net_block_forward.7} parent=39 // pred_region
        %p232 = scmp.lt.s32.totalorder %s20, 1
        %s233 = scalar_select %p232, %s20, 1
        %p234 = scmp.lt.s32.totalorder %s21, 0
        %s235 = scalar_select %p234, %s21, 0
        %s236 = sadd.s32 %s235, %s233
        %s237 = smul.addr %s236, 8
        %s238 = scalar_lea.vmem %s3, %s237
      $region44: #{res2net_block_forward.7} parent=39 // pred_fallthru
        _
    $region40: #{res2net_block_forward.7} parent=5 // pred_fallthru
      _
  $region6: #{res2net_block_forward.7} parent=0 // loop_footer
    %s13 = sadd.s32 1, %s9
  $region7: #{res2net_block_forward.7} parent=0 // loop_footer_branch
    %8 = sbr.rel target = $region3
  $region8: #{res2net_block_forward.7} parent=0 // loop_exit
    _

// kernel: res2net_block_forward.6
$region0: #{res2net_block_forward.6}
  #allocation0 [shape = 'u32[]', space=smem, size = 0x4, offset = 0x4, fixed_abs, tag = 'smem constant byte address 0x4 - core index']
  #allocation1 [shape = 'u32[144,128]{1,0:T(1,128)}', space=vmem, size = 0x12000, scoped, tag = 'internal scratch']
  %s0 = inlined_call_operand.vmem [shape: bf16[2,8,132], index: 0, kind: input, shape index: {}]
  %s1 = inlined_call_operand.vmem [shape: bf16[8,24], index: 1, kind: input, shape index: {}]
  %s2 = inlined_call_operand.vmem [shape: f32[8,1], index: 2, kind: input, shape index: {}]
  %s3 = inlined_call_operand.vmem [shape: bf16[2,8,128], index: 3, kind: output, shape index: {0}]
  %s4 = inlined_call_operand.vmem [shape: f32[2,1,8,2], index: 4, kind: output, shape index: {1}]
  %5 = xla_tuple %s3, %s4
  %s6 = sld [smem:[#allocation0]]
  $region53: #{res2net_block_forward.6} parent=0
    _
  %s8 = ssub.s32 1, %s6
  %s9 = scalar_select 0, %s8, %s6
  loop: start=0, step=1, limit=4
  $region2: #{res2net_block_forward.6} parent=0 // loop_pre_header
    _
  $region3: #{res2net_block_forward.6} parent=0 // loop_header
    %s11 = sphi 0, %s15
    %p12 = scmp.ge.s32.totalorder %s11, 4
    %s18 = sphi 0, %s30
    %s19 = sphi 0, %s26
    %s20 = sphi 0, %s18
    %s21 = sphi 0, %s19
    %s22 = sphi 0, %s20
    %s23 = sphi 0, %s21
    %s33 = sphi 0, %s35
    %s36 = sphi 0, %s33
    %s37 = sphi 0, %s36
    %s53 = sphi 0, %s37
    %s57 = sphi 0, %s57
    %s59 = sphi 0, %s57
    %s60 = sphi 0, %s59
    %s74 = sphi 0, %s60
    %s78 = sphi 0, %s78
    %s80 = sphi 0, %s78
    %s81 = sphi 0, %s80
    %s95 = sphi 0, %s81
    %s103 = sphi 0, %s105
    %s106 = sphi 0, %s103
    %s107 = sphi 0, %s106
    %s123 = sphi 0, %s107
    %s131 = sphi 0, %s133
    %s134 = sphi 0, %s131
    %s135 = sphi 0, %s134
    %s151 = sphi 0, %s135
  $region4: #{res2net_block_forward.6} parent=0 // loop_header_branch
    %14 = sbr.rel (%p12) target = $region8
  $region5: #{res2net_block_forward.6} parent=0 // loop_body
    %s16 = ssub.s32 %s11, 1
    %s17 = ssub.s32 %s11, 2
    %s24 = sadd.s32 1, %s19
    %p25 = scmp.ge.s32.totalorder %s24, 1
    %s26 = scalar_select %p25, 0, %s24
    %s27 = sadd.s32 1, %s18
    %s28 = scalar_select %p25, %s27, %s18
    %p29 = scmp.ge.s32.totalorder %s28, 2
    %s30 = scalar_select %p29, 0, %s28
    %s31 = ssub.s32 %s18, %s30
    %p32 = scmp.eq.s32.totalorder %s31, 0
    %s34 = sadd.s32 %s33, 1
    %s35 = scalar_select %p32, %s33, %s34
    %p38 = pneg %p32
    %p39 = scmp.eq.s32.totalorder %s11, 1
    %p40 = por %p38, %p39
    %p41 = scmp.ne.s32.totalorder %s33, %s36
    %p42 = scmp.eq.s32.totalorder %s11, 0
    %p43 = por %p41, %p42
    %p44 = scmp.ne.s32.totalorder %s33, %s36
    %p45 = scmp.eq.s32.totalorder %s16, 1
    %p46 = por %p44, %p45
    %p47 = scmp.ne.s32.totalorder %s36, %s37
    %p48 = scmp.eq.s32.totalorder %s16, 0
    %p49 = por %p47, %p48
    %p50 = scmp.ne.s32.totalorder %s36, %s37
    %p51 = scmp.eq.s32.totalorder %s17, 1
    %p52 = por %p50, %p51
    %p54 = scmp.ne.s32.totalorder %s37, %s53
    %p55 = scmp.eq.s32.totalorder %s17, 0
    %p56 = por %p54, %p55
    %s58 = sadd.s32 %s57, 1
    %p61 = scmp.eq.s32.totalorder %s11, 1
    %p62 = scmp.ne.s32.totalorder %s57, %s59
    %p63 = scmp.eq.s32.totalorder %s11, 0
    %p64 = por %p62, %p63
    %p65 = scmp.ne.s32.totalorder %s57, %s59
    %p66 = scmp.eq.s32.totalorder %s16, 1
    %p67 = por %p65, %p66
    %p68 = scmp.ne.s32.totalorder %s59, %s60
    %p69 = scmp.eq.s32.totalorder %s16, 0
    %p70 = por %p68, %p69
    %p71 = scmp.ne.s32.totalorder %s59, %s60
    %p72 = scmp.eq.s32.totalorder %s17, 1
    %p73 = por %p71, %p72
    %p75 = scmp.ne.s32.totalorder %s60, %s74
    %p76 = scmp.eq.s32.totalorder %s17, 0
    %p77 = por %p75, %p76
    %s79 = sadd.s32 %s78, 1
    %p82 = scmp.eq.s32.totalorder %s11, 1
    %p83 = scmp.ne.s32.totalorder %s78, %s80
    %p84 = scmp.eq.s32.totalorder %s11, 0
    %p85 = por %p83, %p84
    %p86 = scmp.ne.s32.totalorder %s78, %s80
    %p87 = scmp.eq.s32.totalorder %s16, 1
    %p88 = por %p86, %p87
    %p89 = scmp.ne.s32.totalorder %s80, %s81
    %p90 = scmp.eq.s32.totalorder %s16, 0
    %p91 = por %p89, %p90
    %p92 = scmp.ne.s32.totalorder %s80, %s81
    %p93 = scmp.eq.s32.totalorder %s17, 1
    %p94 = por %p92, %p93
    %p96 = scmp.ne.s32.totalorder %s81, %s95
    %p97 = scmp.eq.s32.totalorder %s17, 0
    %p98 = por %p96, %p97
    %s99 = ssub.s32 %s18, %s30
    %s100 = ssub.s32 %s19, %s26
    %s101 = sor.u32 %s99, %s100
    %p102 = scmp.eq.s32.totalorder %s101, 0
    %s104 = sadd.s32 %s103, 1
    %s105 = scalar_select %p102, %s103, %s104
    %p108 = pneg %p102
    %p109 = scmp.eq.s32.totalorder %s11, 1
    %p110 = por %p108, %p109
    %p111 = scmp.ne.s32.totalorder %s103, %s106
    %p112 = scmp.eq.s32.totalorder %s11, 0
    %p113 = por %p111, %p112
    %p114 = scmp.ne.s32.totalorder %s103, %s106
    %p115 = scmp.eq.s32.totalorder %s16, 1
    %p116 = por %p114, %p115
    %p117 = scmp.ne.s32.totalorder %s106, %s107
    %p118 = scmp.eq.s32.totalorder %s16, 0
    %p119 = por %p117, %p118
    %p120 = scmp.ne.s32.totalorder %s106, %s107
    %p121 = scmp.eq.s32.totalorder %s17, 1
    %p122 = por %p120, %p121
    %p124 = scmp.ne.s32.totalorder %s107, %s123
    %p125 = scmp.eq.s32.totalorder %s17, 0
    %p126 = por %p124, %p125
    %s127 = ssub.s32 %s18, %s30
    %s128 = ssub.s32 %s19, %s26
    %s129 = sor.u32 %s127, %s128
    %p130 = scmp.eq.s32.totalorder %s129, 0
    %s132 = sadd.s32 %s131, 1
    %s133 = scalar_select %p130, %s131, %s132
    %p136 = pneg %p130
    %p137 = scmp.eq.s32.totalorder %s11, 1
    %p138 = por %p136, %p137
    %p139 = scmp.ne.s32.totalorder %s131, %s134
    %p140 = scmp.eq.s32.totalorder %s11, 0
    %p141 = por %p139, %p140
    %p142 = scmp.ne.s32.totalorder %s131, %s134
    %p143 = scmp.eq.s32.totalorder %s16, 1
    %p144 = por %p142, %p143
    %p145 = scmp.ne.s32.totalorder %s134, %s135
    %p146 = scmp.eq.s32.totalorder %s16, 0
    %p147 = por %p145, %p146
    %p148 = scmp.ne.s32.totalorder %s134, %s135
    %p149 = scmp.eq.s32.totalorder %s17, 1
    %p150 = por %p148, %p149
    %p152 = scmp.ne.s32.totalorder %s135, %s151
    %p153 = scmp.eq.s32.totalorder %s17, 0
    %p154 = por %p152, %p153
    %p155 = scmp.le.s32.totalorder 1, %s11
    %p156 = scmp.lt.s32.totalorder %s11, 3
    %p157 = pnand %p155, %p156
    %p158 = pneg %p157
    // Predicated region
    $region9: #{res2net_block_forward.6} parent=5 // pred_check
      _
    $region10: #{res2net_block_forward.6} parent=5 // pred_check_branch
      %160 = sbr.rel (%p157) target = $region12
    $region11: #{res2net_block_forward.6} parent=5 // pred_region
      %s161 = ssub.s32 %s11, 1
      // Predicated region
      $region13: #{res2net_block_forward.6} parent=11 // pred_check
        %p162 = pneg %p70
      $region14: #{res2net_block_forward.6} parent=11 // pred_check_branch
        %164 = sbr.rel (%p162) target = $region16
      $region15: #{res2net_block_forward.6} parent=11 // pred_region
        _
      $region16: #{res2net_block_forward.6} parent=11 // pred_fallthru
        _
      // Predicated region
      $region17: #{res2net_block_forward.6} parent=11 // pred_check
        %p165 = pneg %p91
      $region18: #{res2net_block_forward.6} parent=11 // pred_check_branch
        %167 = sbr.rel (%p165) target = $region20
      $region19: #{res2net_block_forward.6} parent=11 // pred_region
        _
      $region20: #{res2net_block_forward.6} parent=11 // pred_fallthru
        _
    $region12: #{res2net_block_forward.6} parent=5 // pred_fallthru
      _
    %p168 = scmp.lt.s32.totalorder %s11, 2
    // Predicated region
    $region21: #{res2net_block_forward.6} parent=5 // pred_check
      %p169 = pneg %p168
    $region22: #{res2net_block_forward.6} parent=5 // pred_check_branch
      %171 = sbr.rel (%p169) target = $region24
    $region23: #{res2net_block_forward.6} parent=5 // pred_region
      // Predicated region
      $region25: #{res2net_block_forward.6} parent=23 // pred_check
        %p172 = pneg %p43
      $region26: #{res2net_block_forward.6} parent=23 // pred_check_branch
        %174 = sbr.rel (%p172) target = $region28
      $region27: #{res2net_block_forward.6} parent=23 // pred_region
        %p175 = scmp.lt.s32.totalorder %s18, 1
        %s176 = scalar_select %p175, %s18, 1
        %s177 = smul.addr %s176, 2
        %s178 = smul.addr %s177, 4
        %s179 = scalar_lea.vmem %s0, %s178
      $region28: #{res2net_block_forward.6} parent=23 // pred_fallthru
        _
    $region24: #{res2net_block_forward.6} parent=5 // pred_fallthru
      _
    %p180 = scmp.le.s32.totalorder 1, %s11
    %p181 = scmp.lt.s32.totalorder %s11, 3
    %p182 = pnand %p180, %p181
    %p183 = pneg %p182
    // Predicated region
    $region29: #{res2net_block_forward.6} parent=5 // pred_check
      _
    $region30: #{res2net_block_forward.6} parent=5 // pred_check_branch
      %185 = sbr.rel (%p182) target = $region32
    $region31: #{res2net_block_forward.6} parent=5 // pred_region
      %s186 = ssub.s32 %s11, 1
      %p187 = scmp.lt.s32.totalorder %s20, 1
      %s188 = scalar_select %p187, %s20, 1
      %s189 = smul.addr %s188, 2
      %s190 = smul.addr %s189, 4
      %s191 = scalar_lea.vmem %s0, %s190
      %p192 = pneg %p49
      %p193 = pneg %p46
      %p194 = pneg %p70
      %p195 = pneg %p67
      %p196 = pneg %p91
      %p197 = pneg %p88
      %p198 = pneg %p119
      %p199 = pneg %p116
      %p200 = scmp.lt.s32.totalorder %s20, 1
      %s201 = scalar_select %p200, %s20, 1
      %p202 = scmp.lt.s32.totalorder %s21, 0
      %s203 = scalar_select %p202, %s21, 0
      %s204 = sadd.s32 %s203, %s201
      %s205 = smul.addr %s204, 4
      %s206 = scalar_lea.vmem %s3, %s205
      %p207 = pneg %p147
      %p208 = pneg %p144
      %p209 = scmp.lt.s32.totalorder %s20, 1
      %s210 = scalar_select %p209, %s20, 1
      %p211 = scmp.lt.s32.totalorder %s21, 0
      %s212 = scalar_select %p211, %s21, 0
      %s213 = sadd.s32 %s212, %s210
      %s214 = smul.addr %s213, 8
      %s215 = scalar_lea.vmem %s4, %s214
      %p216 = scmp.lt.s32.totalorder %s20, 1
      %s217 = scalar_select %p216, %s20, 1
      %s218 = smul.addr %s217, 2
      %s219 = smul.addr %s218, 4
      %s220 = scalar_lea.vmem %s0, %s219
      %p221 = scmp.lt.s32.totalorder %s20, 1
      %s222 = scalar_select %p221, %s20, 1
      %p223 = scmp.lt.s32.totalorder %s21, 0
      %s224 = scalar_select %p223, %s21, 0
      %s225 = sadd.s32 %s224, %s222
      %s226 = smul.addr %s225, 4
      %s227 = scalar_lea.vmem %s3, %s226
      %p228 = scmp.lt.s32.totalorder %s20, 1
      %s229 = scalar_select %p228, %s20, 1
      %p230 = scmp.lt.s32.totalorder %s21, 0
      %s231 = scalar_select %p230, %s21, 0
      %s232 = sadd.s32 %s231, %s229
      %s233 = smul.addr %s232, 8
      %s234 = scalar_lea.vmem %s4, %s233
      %s236 = smul.u32 %s21, 128
      %s237 = sshra.s32 %s236, 7
      %s238 = sand.u32 %s236, 127
      %s239 = smul.addr %s237, 4
      %s240 = scalar_lea.vmem %s220, %s239
      %v241 = vld [vmem:[%s240] sm:$0xff]
      %v243 = vunpack.c.l.b16 %v241
      %v244 = vunpack.c.h.b16 %v241
      %v245 = vpack.c.b16 %v243, %v243
      %v246 = vpack.c.b16 %v244, %v244
      %247 = vrot.lane.b32.xlu0 %v245, 126
      %v248 = vpop.permute.xlu0 %247
      %249 = vrot.lane.b32.xlu0 %v246, 126
      %v250 = vpop.permute.xlu0 %249
      %vm251 = vcmask 1031168
      %v252 = vsel %vm251, %v248, %v250
      %253 = vrot.lane.b32.xlu0 %v245, 124
      %v254 = vpop.permute.xlu0 %253
      %255 = vrot.lane.b32.xlu0 %v246, 124
      %v256 = vpop.permute.xlu0 %255
      %vm257 = vcmask 1014784
      %v258 = vsel %vm257, %v254, %v256
      %vm259 = vcmask 1043456
      %v262 = vsel %vm259, %v241, %v252
      %v264 = vld [vmem:[%s1] sm:$0xf]
      %v265 = vld [vmem:[%s2] sm:$0xff]
      %267 = vset.pattern.permute.xlu0 0
      %268 = vperm.xlu0 %267, %v265
      %v269 = vpop.permute.xlu0 %268
      %vm271 = vcmask 195584
      %v273 = vsel %vm271, %v264, 0
      %v276 = vsel %vm259, %v258, 0
      %278 = vmatprep.subr.bf16.mxu0 0
      %279 = vmatpush1.bf16.msra.mxu0 %v262
      %280 = vmatprep.subr.bf16.mxu0 0
      %281 = vmatpush1.bf16.msra.mxu0 %v276
      %282 = vmatprep.subr.bf16.mxu0 0
      %283 = vmatpush1.bf16.msra.mxu0 0
      %284 = vmatprep.subr.bf16.mxu0 0
      %285 = vmatpush1.bf16.msra.mxu0 0
      %286 = vmatprep.subr.bf16.mxu0 0
      %287 = vmatpush1.bf16.msra.mxu0 0
      %288 = vmatprep.subr.bf16.mxu0 0
      %289 = vmatpush1.bf16.msra.mxu0 0
      %290 = vmatprep.subr.bf16.mxu0 0
      %291 = vmatpush1.bf16.msra.mxu0 0
      %292 = vmatprep.subr.bf16.mxu0 0
      %293 = vmatpush1.bf16.msra.mxu0 0
      %294 = vmatprep.subr.bf16.mxu0 0
      %295 = vmatpush1.bf16.msra.mxu0 0
      %296 = vmatprep.subr.bf16.mxu0 0
      %297 = vmatpush1.bf16.msra.mxu0 0
      %298 = vmatprep.subr.bf16.mxu0 0
      %299 = vmatpush1.bf16.msra.mxu0 0
      %300 = vmatprep.subr.bf16.mxu0 0
      %301 = vmatpush1.bf16.msra.mxu0 0
      %302 = vmatprep.subr.bf16.mxu0 0
      %303 = vmatpush1.bf16.msra.mxu0 0
      %304 = vmatprep.subr.bf16.mxu0 0
      %305 = vmatpush1.bf16.msra.mxu0 0
      %306 = vmatprep.subr.bf16.mxu0 0
      %307 = vmatpush1.bf16.msra.mxu0 0
      %308 = vmatprep.subr.bf16.mxu0 0
      %309 = vmatpush1.bf16.msra.mxu0 0
      %310 = vmatprep.mubr.bf16.mxu0 0
      %311 = vmatmul.mubr.bf16.gmra.mrb[0].mxu0 %v273
      %v312 = vpop.f32.mrb[0].mxu0
      %v313 = vadd.f32 %v269, %v312
      %v314 = vpop.f32.mrb[0].mxu0
      %v315 = vpop.f32.mrb[0].mxu0
      %v316 = vpop.f32.mrb[0].mxu0
      %317 = vdwg.mxu0
      %v318 = vmax.f32 %v313, 0.0
      %v319 = vpack.c.bf16 %v318, %v318
      %320 = vst [vmem:[%s227] sm:$0xf] %v319
      %v321 = vlaneseq
      %v322 = vand.u32 %v321, 127
      %v323 = vstv %s236
      %v324 = vadd.s32 %v323, %v322
      %vm325 = vcmp.lt.s32.totalorder %v324, 64
      %v326 = vsel %vm325, %v318, 0.0
      %327 = vadd.xlane.f32.xlu0 %v326
      %v328 = vpop.xlane.xlu0 %327
      %v329 = vmul.f32 %v326, %v326
      %330 = vadd.xlane.f32.xlu0 %v329
      %v331 = vpop.xlane.xlu0 %330
      %vm332 = vcmask 7168
      %v333 = vsel %vm332, %v328, %v331
      %vm334 = vcmask 15360
      %335 = vst.msk [vmem:[%s234] sm:$0xff] %vm334, %v333
      %p336 = scmp.lt.s32.totalorder %s20, 1
      %s337 = scalar_select %p336, %s20, 1
      %p338 = scmp.lt.s32.totalorder %s21, 0
      %s339 = scalar_select %p338, %s21, 0
      %s340 = sadd.s32 %s339, %s337
      %s341 = smul.addr %s340, 4
      %s342 = scalar_lea.vmem %s3, %s341
      %p343 = scmp.lt.s32.totalorder %s20, 1
      %s344 = scalar_select %p343, %s20, 1
      %p345 = scmp.lt.s32.totalorder %s21, 0
      %s346 = scalar_select %p345, %s21, 0
      %s347 = sadd.s32 %s346, %s344
      %s348 = smul.addr %s347, 8
      %s349 = scalar_lea.vmem %s4, %s348
      // Predicated region
      $region33: #{res2net_block_forward.6} parent=31 // pred_check
        %p350 = pneg %p116
      $region34: #{res2net_block_forward.6} parent=31 // pred_check_branch
        %352 = sbr.rel (%p350) target = $region36
      $region35: #{res2net_block_forward.6} parent=31 // pred_region
        _
      $region36: #{res2net_block_forward.6} parent=31 // pred_fallthru
        _
      // Predicated region
      $region37: #{res2net_block_forward.6} parent=31 // pred_check
        %p353 = pneg %p144
      $region38: #{res2net_block_forward.6} parent=31 // pred_check_branch
        %355 = sbr.rel (%p353) target = $region40
      $region39: #{res2net_block_forward.6} parent=31 // pred_region
        _
      $region40: #{res2net_block_forward.6} parent=31 // pred_fallthru
        _
    $region32: #{res2net_block_forward.6} parent=5 // pred_fallthru
      _
    %p356 = scmp.le.s32.totalorder 2, %s11
    // Predicated region
    $region41: #{res2net_block_forward.6} parent=5 // pred_check
      %p357 = pneg %p356
    $region42: #{res2net_block_forward.6} parent=5 // pred_check_branch
      %359 = sbr.rel (%p357) target = $region44
    $region43: #{res2net_block_forward.6} parent=5 // pred_region
      %s360 = ssub.s32 %s11, 2
      // Predicated region
      $region45: #{res2net_block_forward.6} parent=43 // pred_check
        %p361 = pneg %p122
      $region46: #{res2net_block_forward.6} parent=43 // pred_check_branch
        %363 = sbr.rel (%p361) target = $region48
      $region47: #{res2net_block_forward.6} parent=43 // pred_region
        %p364 = scmp.lt.s32.totalorder %s22, 1
        %s365 = scalar_select %p364, %s22, 1
        %p366 = scmp.lt.s32.totalorder %s23, 0
        %s367 = scalar_select %p366, %s23, 0
        %s368 = sadd.s32 %s367, %s365
        %s369 = smul.addr %s368, 4
        %s370 = scalar_lea.vmem %s3, %s369
      $region48: #{res2net_block_forward.6} parent=43 // pred_fallthru
        _
      // Predicated region
      $region49: #{res2net_block_forward.6} parent=43 // pred_check
        %p371 = pneg %p150
      $region50: #{res2net_block_forward.6} parent=43 // pred_check_branch
        %373 = sbr.rel (%p371) target = $region52
      $region51: #{res2net_block_forward.6} parent=43 // pred_region
        %p374 = scmp.lt.s32.totalorder %s22, 1
        %s375 = scalar_select %p374, %s22, 1
        %p376 = scmp.lt.s32.totalorder %s23, 0
        %s377 = scalar_select %p376, %s23, 0
        %s378 = sadd.s32 %s377, %s375
        %s379 = smul.addr %s378, 8
        %s380 = scalar_lea.vmem %s4, %s379
      $region52: #{res2net_block_forward.6} parent=43 // pred_fallthru
        _
    $region44: #{res2net_block_forward.6} parent=5 // pred_fallthru
      _
  $region6: #{res2net_block_forward.6} parent=0 // loop_footer
    %s15 = sadd.s32 1, %s11
  $region7: #{res2net_block_forward.6} parent=0 // loop_footer_branch
    %10 = sbr.rel target = $region3
  $region8: #{res2net_block_forward.6} parent=0 // loop_exit
    _

</llo_original>
